<compile_context>
chip_gen: v6e
topology: v6e:2x2x1
jax: 0.10.0
libtpu: 0.0.40
codegen_flags: <defaults>
</compile_context>

<pallas_src>
import jax
import jax.numpy as jnp
from jax.experimental import pallas as pl
from jax.experimental.pallas import tpu as pltpu


def _dequant_kernel(x_ref, o_ref):
    # Pure elementwise integer -> float32 cast on the VPU.
    o_ref[...] = x_ref[...].astype(jnp.float32)


_LANES = 128
_WIDE_LANES = 8192                  # lane-dense last dim for the tiled path
_TARGET_BLOCK_ELEMS = 512 * 1024    # ~2 MiB f32 per block (<= 8 MiB resident, 2x buffered)


def _sublane_multiple(dtype):
    itemsize = jnp.dtype(dtype).itemsize
    if itemsize == 1:
        return 32
    if itemsize == 2:
        return 16
    return 8


def dequant(x):
    """x.to(torch.float32) as a Pallas TPU kernel. Shape- and dtype-agnostic."""
    orig_shape = x.shape
    n = x.size
    in_bytes = jnp.dtype(x.dtype).itemsize
    cost = pl.CostEstimate(flops=0, transcendentals=0,
                           bytes_accessed=n * (in_bytes + 4))

    sub = _sublane_multiple(x.dtype)
    x_flat = x.reshape(-1)

    # Block sizing: ~_TARGET_BLOCK_ELEMS elements, rows aligned to the input
    # dtype's sublane packing so no repacking / masked partial loads occur.
    block_rows = max(sub, (_TARGET_BLOCK_ELEMS // _WIDE_LANES) // sub * sub)
    block_elems = block_rows * _WIDE_LANES

    if n <= block_elems:
        # --- Small-tensor fast path: one whole-array block, no grid. ---
        quantum = sub * _LANES
        n_pad = pl.cdiv(n, quantum) * quantum
        x2d = jnp.pad(x_flat, (0, n_pad - n)).reshape(n_pad // quantum, quantum)
        out2d = pl.pallas_call(
            _dequant_kernel,
            out_shape=jax.ShapeDtypeStruct(x2d.shape, jnp.float32),
            cost_estimate=cost,
        )(x2d)
        return out2d.reshape(-1)[:n].reshape(orig_shape)

    # --- Tiled path: wide lane-dense slab, MiB-scale blocks, parallel grid. ---
    n_pad = pl.cdiv(n, block_elems) * block_elems
    rows = n_pad // _WIDE_LANES
    x2d = jnp.pad(x_flat, (0, n_pad - n)).reshape(rows, _WIDE_LANES)

    out2d = pl.pallas_call(
        _dequant_kernel,
        out_shape=jax.ShapeDtypeStruct((rows, _WIDE_LANES), jnp.float32),
        grid_spec=pl.GridSpec(
            grid=(rows // block_rows,),
            in_specs=[pl.BlockSpec((block_rows, _WIDE_LANES), lambda i: (i, 0))],
            out_specs=pl.BlockSpec((block_rows, _WIDE_LANES), lambda i: (i, 0)),
        ),
        compiler_params=pltpu.CompilerParams(
            dimension_semantics=("parallel",),
            vmem_limit_bytes=32 << 20,   # covers 2x(in+out) buffers on all gens
        ),
        cost_estimate=cost,
    )(x2d)
    return out2d.reshape(-1)[:n].reshape(orig_shape)


# TODO(synk): the qconfig-!=-None branch raises NotImplementedError in PyTorch;
# nothing to translate there.


if __name__ == "__main__":
    key = jax.random.PRNGKey(0)
    k1, k2, k3 = jax.random.split(key, 3)

    # 1) Primary test: small NCHW int32 activation tensor (fast path).
    x32 = jax.random.randint(k1, (2, 4, 16, 16), minval=-128, maxval=128,
                             dtype=jnp.int32)
    y32 = dequant(x32)
    jax.block_until_ready(y32)
    ref32 = x32.astype(jnp.float32)
    assert y32.dtype == jnp.float32 and y32.shape == x32.shape
    assert bool(jnp.all(y32 == ref32))

    # 2) int8 input (typical quantized dtype; exercises dtype-aware alignment).
    x8 = jax.random.randint(k2, (2, 4, 16, 16), minval=-128, maxval=127,
                            dtype=jnp.int32).astype(jnp.int8)
    y8 = dequant(x8)
    jax.block_until_ready(y8)
    assert y8.dtype == jnp.float32 and y8.shape == x8.shape
    assert bool(jnp.all(y8 == x8.astype(jnp.float32)))

    # 3) Larger tensor to exercise the tiled (wide-slab, parallel-grid) path.
    xl = jax.random.randint(k3, (2, 8, 256, 256), minval=-128, maxval=128,
                            dtype=jnp.int32)
    yl = dequant(xl)
    jax.block_until_ready(yl)
    assert yl.dtype == jnp.float32 and yl.shape == xl.shape
    assert bool(jnp.all(yl == xl.astype(jnp.float32)))

    print("KERNEL_OK")
</pallas_src>

<mosaic_0001>
module attributes {stable_mosaic.version = 11 : i64} {
  func.func @_dequant_kernel(%arg0: memref<2x1024xi32, #tpu.memory_space<vmem>>, %arg1: memref<2x1024xf32, #tpu.memory_space<vmem>>) attributes {dimension_semantics = [], scalar_prefetch = 0 : i64, scratch_operands = 0 : i64, tpu.core_type = #tpu.core_type<tc>} {
    %c0 = arith.constant 0 : index
    %c0_0 = arith.constant 0 : index
    %0 = vector.load %arg0[%c0, %c0_0] : memref<2x1024xi32, #tpu.memory_space<vmem>>, vector<2x1024xi32>
    %1 = arith.sitofp %0 : vector<2x1024xi32> to vector<2x1024xf32>
    %c0_1 = arith.constant 0 : index
    %c0_2 = arith.constant 0 : index
    %2 = vector.load %arg1[%c0_1, %c0_2] : memref<2x1024xf32, #tpu.memory_space<vmem>>, vector<2x1024xf32>
    tpu.vector_store %arg1[%c0_1, %c0_2], %1 {strides = array<i32>} : memref<2x1024xf32, #tpu.memory_space<vmem>>, vector<2x1024xf32>,
    return
  }
}

</mosaic_0001>

<llo_original>
// kernel: tpu_custom_call.1
$region0: #{tpu_custom_call.1}
  #allocation0 [shape = 'u32[]', space=smem, size = 0x4, offset = 0x4, fixed_abs, tag = 'smem constant byte address 0x4 - core index']
  #allocation1 [shape = 'u32[144,128]{1,0:T(1,128)}', space=vmem, size = 0x12000, scoped, tag = 'internal scratch']
  %s0 = inlined_call_operand.hbm [shape: s32[2,1024], index: 0, kind: input, shape index: {}]
  %s1 = inlined_call_operand.hbm [shape: f32[2,1024], index: 1, kind: output, shape index: {}]
  %s2 = sld [smem:[#allocation0]]
  $region18: #{tpu_custom_call.1} parent=0
    _
  %s4 = ssub.s32 1, %s2
  %s5 = scalar_select 0, %s4, %s2
  $region1: #{tpu_custom_call.1} parent=0
    #allocation2 [shape = 'u8[8192]{0}', space=vmem, size = 0x2000, scoped, tag = 'input window, operand 0, single buffered']
    #allocation3 [shape = 's32[1]{0}', space=sflag, size = 0x4, scoped, tag = 'scoped memory for tpu_custom_call.1']
    #allocation4 [shape = 's32[1]{0}', space=sflag, size = 0x4, scoped, tag = 'scoped memory for tpu_custom_call.1']
    #allocation5 [shape = 'u8[8192]{0}', space=vmem, size = 0x2000, scoped, tag = 'output window, operand 0, single buffered']
    %6 = vsyncpa [#allocation3], 0
    %7 = vsyncpa [#allocation4], 0
    // Predicated region
    $region2: #{tpu_custom_call.1} parent=1 // pred_check
      _
    $region3: #{tpu_custom_call.1} parent=1 // pred_check_branch
      %9 = sbr.rel (0) target = $region5
    $region4: #{tpu_custom_call.1} parent=1 // pred_region
      %s11 = ssub.s32 256, 256
      %12 = vsyncadd [#allocation3], %s11
      %s14 = sshll.u32 [#allocation2], 4
      %s15 = int_to_ptr.vmem [resolvable:$true] %s14
      %17 = dma.hbm_to_vmem [thread:$0]  %s0, 256, %s15, [#allocation3]
    $region5: #{tpu_custom_call.1} parent=1 // pred_fallthru
      _
    // Predicated region
    $region6: #{tpu_custom_call.1} parent=1 // pred_check
      _
    $region7: #{tpu_custom_call.1} parent=1 // pred_check_branch
      %19 = sbr.rel (0) target = $region9
    $region8: #{tpu_custom_call.1} parent=1 // pred_region
      %20 = dma.done [#allocation3], 256
    $region9: #{tpu_custom_call.1} parent=1 // pred_fallthru
      _
    %v21 = vld [vmem:[#allocation2] sm:$0xff]
    %v22 = vld [vmem:[#allocation2 + $0x8] sm:$0xff]
    %v23 = vcvt.s32.f32 %v21
    %v24 = vcvt.s32.f32 %v22
    %25 = vst [vmem:[#allocation5] sm:$0xff] %v23
    %26 = vst [vmem:[#allocation5 + $0x8] sm:$0xff] %v24
    // Predicated region
    $region10: #{tpu_custom_call.1} parent=1 // pred_check
      _
    $region11: #{tpu_custom_call.1} parent=1 // pred_check_branch
      %28 = sbr.rel (0) target = $region13
    $region12: #{tpu_custom_call.1} parent=1 // pred_region
      %s30 = ssub.s32 256, 256
      %31 = vsyncadd [#allocation4], %s30
      %s33 = sshll.u32 [#allocation5], 4
      %s34 = int_to_ptr.vmem [resolvable:$true] %s33
      %36 = dma.vmem_to_hbm [thread:$0]  %s34, 256, %s1, [#allocation4]
    $region13: #{tpu_custom_call.1} parent=1 // pred_fallthru
      _
    // Predicated region
    $region14: #{tpu_custom_call.1} parent=1 // pred_check
      _
    $region15: #{tpu_custom_call.1} parent=1 // pred_check_branch
      %38 = sbr.rel (0) target = $region17
    $region16: #{tpu_custom_call.1} parent=1 // pred_region
      %39 = dma.done [#allocation4], 256
    $region17: #{tpu_custom_call.1} parent=1 // pred_fallthru
      _
    %40 = vsyncpa [#allocation3], 1
    %41 = vsyncpa [#allocation4], 1

</llo_original>
